<compile_context>
chip_gen: v6e
topology: v6e:2x2x1
jax: 0.10.0
libtpu: 0.0.40
codegen_flags: <defaults>
</compile_context>

<pallas_src>
import jax
import jax.numpy as jnp
from jax import lax
from jax.experimental import pallas as pl
from jax.experimental.pallas import tpu as pltpu


# ----------------------------------------------------------------------------
# Kernel 1: row-wise L2 normalization of the embedding table (init-time).
# ----------------------------------------------------------------------------
def _normalize_kernel(w_ref, out_ref):
    w = w_ref[...]                                               # (rows, D) f32
    inv_norm = lax.rsqrt(jnp.sum(w * w, axis=-1, keepdims=True))  # EUP rsqrt
    out_ref[...] = w * inv_norm


def normalize_rows(weight, *, rows_per_block=256):
    V, D = weight.shape
    rows_per_block = min(rows_per_block, max(8, V))
    V_pad = pl.cdiv(V, rows_per_block) * rows_per_block
    if V_pad != V:
        # Pad with ones so padded rows have a nonzero norm (values discarded).
        pad = jnp.ones((V_pad - V, D), weight.dtype)
        w_in = jnp.concatenate([weight, pad], axis=0)
    else:
        w_in = weight
    out = pl.pallas_call(
        _normalize_kernel,
        out_shape=jax.ShapeDtypeStruct((V_pad, D), weight.dtype),
        grid_spec=pltpu.PrefetchScalarGridSpec(
            num_scalar_prefetch=0,
            grid=(V_pad // rows_per_block,),
            in_specs=[pl.BlockSpec((rows_per_block, D), lambda i: (i, 0))],
            out_specs=pl.BlockSpec((rows_per_block, D), lambda i: (i, 0)),
        ),
        compiler_params=pltpu.CompilerParams(
            dimension_semantics=("parallel",)),
    )(w_in)
    return out[:V] if V_pad != V else out


# ----------------------------------------------------------------------------
# Kernel 2a: embedding lookup with the table resident in VMEM.
# The weight BlockSpec has a constant block index, so the whole table is DMA'd
# HBM->VMEM once and re-used for every grid step; each step gathers T rows
# with in-VMEM dynamic sublane slices and writes one (T, D) output block.
# ----------------------------------------------------------------------------
def _embed_resident_kernel(ids_ref, w_ref, out_ref):
    t_block = out_ref.shape[0]
    base = pl.program_id(0) * t_block
    for t in range(t_block):                      # static, unrolled
        row = ids_ref[base + t]                   # SMEM scalar read
        out_ref[pl.ds(t, 1), :] = w_ref[pl.ds(row, 1), :]


# ----------------------------------------------------------------------------
# Kernel 2b: embedding lookup with the table left in HBM (large vocab).
# T independent row-gather DMAs per grid step (all in flight concurrently),
# drained, then a single (T, D) aligned output store.
# ----------------------------------------------------------------------------
def _embed_hbm_gather_kernel(ids_ref, w_hbm, out_ref, rows_vmem, sems):
    t_block = out_ref.shape[0]
    base = pl.program_id(0) * t_block
    # Kick off all row gathers.
    for t in range(t_block):
        row = ids_ref[base + t]
        pltpu.make_async_copy(
            w_hbm.at[pl.ds(row, 1), :], rows_vmem.at[pl.ds(t, 1), :], sems.at[t]
        ).start()
    # Drain them.
    for t in range(t_block):
        row = ids_ref[base + t]
        pltpu.make_async_copy(
            w_hbm.at[pl.ds(row, 1), :], rows_vmem.at[pl.ds(t, 1), :], sems.at[t]
        ).wait()
    out_ref[...] = rows_vmem[...]


def embedding_lookup(ids_flat, weight, *, tokens_per_block=16,
                     table_vmem_budget_bytes=16 * 1024 * 1024):
    N = ids_flat.shape[0]
    V, D = weight.shape
    T = tokens_per_block
    N_pad = pl.cdiv(N, T) * T
    if N_pad != N:
        ids_flat = jnp.concatenate(
            [ids_flat, jnp.zeros((N_pad - N,), ids_flat.dtype)])
    grid = (N_pad // T,)
    table_bytes = V * D * weight.dtype.itemsize

    if table_bytes <= table_vmem_budget_bytes:
        # --- Resident-table path ---
        out = pl.pallas_call(
            _embed_resident_kernel,
            out_shape=jax.ShapeDtypeStruct((N_pad, D), weight.dtype),
            grid_spec=pltpu.PrefetchScalarGridSpec(
                num_scalar_prefetch=1,                      # ids -> SMEM
                grid=grid,
                in_specs=[pl.BlockSpec((V, D), lambda i, ids: (0, 0))],
                out_specs=pl.BlockSpec((T, D), lambda i, ids: (i, 0)),
            ),
            compiler_params=pltpu.CompilerParams(
                dimension_semantics=("parallel",),
                vmem_limit_bytes=int(table_bytes) + 8 * 1024 * 1024,
            ),
        )(ids_flat, weight)
    else:
        # --- Large-table path: manual batched row-gather DMAs from HBM ---
        out = pl.pallas_call(
            _embed_hbm_gather_kernel,
            out_shape=jax.ShapeDtypeStruct((N_pad, D), weight.dtype),
            grid_spec=pltpu.PrefetchScalarGridSpec(
                num_scalar_prefetch=1,                      # ids -> SMEM
                grid=grid,
                in_specs=[pl.BlockSpec(memory_space=pl.ANY)],   # raw HBM table
                out_specs=pl.BlockSpec((T, D), lambda i, ids: (i, 0)),
                scratch_shapes=[
                    pltpu.VMEM((T, D), weight.dtype),
                    pltpu.SemaphoreType.DMA((T,)),
                ],
            ),
            compiler_params=pltpu.CompilerParams(
                dimension_semantics=("parallel",)),
        )(ids_flat, weight)

    return out[:N] if N_pad != N else out


# ----------------------------------------------------------------------------
# EmbeddingLayer wrapper (deterministic synthetic parameters).
# ----------------------------------------------------------------------------
class EmbeddingLayerPallas:
    def __init__(self, n_d, word2id, embs=None, fix_emb=True,
                 oov='<oov>', pad='<pad>', normalize=True, key=None):
        self.word2id = word2id
        self.id2word = {i: w for w, i in word2id.items()}
        self.n_V = len(word2id)
        if embs is not None:
            embwords, embvecs = embs
            embvecs = jnp.asarray(embvecs, dtype=jnp.float32)
            if n_d != embvecs.shape[1]:
                n_d = int(embvecs.shape[1])
        self.n_d = n_d
        self.oovid = word2id[oov]
        self.padid = word2id[pad]
        if key is None:
            key = jax.random.PRNGKey(0)
        # nn.Embedding weight, then .uniform_(-0.25, 0.25)
        weight = jax.random.uniform(
            key, (self.n_V, self.n_d), dtype=jnp.float32,
            minval=-0.25, maxval=0.25)
        if embs is not None:
            weight = weight.at[:len(embwords)].set(embvecs)
        if normalize:
            weight = normalize_rows(weight)
        self.weight = weight
        # TODO(synk): fix_emb / padding_idx only constrain gradients; no
        # backward pass is implemented here (forward values are unaffected).

    def __call__(self, input_):
        # input_: (B, S) int token ids -> (B, S, n_d) float32
        B, S = input_.shape
        ids_flat = input_.reshape(-1).astype(jnp.int32)
        # Guard the data-dependent gather: map out-of-range ids to <oov>.
        ids_flat = jnp.where((ids_flat < 0) | (ids_flat >= self.n_V),
                             jnp.int32(self.oovid), ids_flat)
        out_flat = embedding_lookup(ids_flat, self.weight)
        return out_flat.reshape(B, S, self.n_d)


if __name__ == "__main__":
    key = jax.random.PRNGKey(0)
    k_w, k_ids = jax.random.split(key)

    # Synthetic vocab: <pad>, <oov> + 1000 words (V = 1002, not 8-aligned on
    # purpose to exercise the remainder handling).
    vocab = ["<pad>", "<oov>"] + [f"w{i}" for i in range(1000)]
    word2id = {w: i for i, w in enumerate(vocab)}

    n_d = 128          # embedding dim (lane-aligned)
    batch, seq = 2, 37  # N = 74 tokens -> padded to 80 (5 grid steps of 16)

    layer = EmbeddingLayerPallas(n_d, word2id, normalize=True, key=k_w)

    # Normalization check: every row of the Pallas-normalized table is unit L2.
    norms = jnp.linalg.norm(layer.weight, axis=1)
    assert jnp.allclose(norms, 1.0, atol=1e-3), "normalize_rows mismatch"

    ids = jax.random.randint(k_ids, (batch, seq), 0, len(vocab), dtype=jnp.int32)

    out = layer(ids)
    out = jax.block_until_ready(out)

    # Reference check against plain JAX gather of the same (normalized) table.
    ref = layer.weight[ids]
    assert out.shape == (batch, seq, n_d)
    assert out.dtype == jnp.float32
    assert jnp.allclose(out, ref, atol=1e-6), "mismatch vs reference gather"

    # Also exercise the large-table (manual HBM row-gather DMA) path.
    ids_flat = ids.reshape(-1)
    out_hbm = embedding_lookup(ids_flat, layer.weight,
                               table_vmem_budget_bytes=0)
    out_hbm = jax.block_until_ready(out_hbm)
    assert jnp.allclose(out_hbm, ref.reshape(-1, n_d), atol=1e-6), \
        "mismatch in HBM-gather path"

    print("KERNEL_OK")
</pallas_src>

<mosaic_0001>
module attributes {stable_mosaic.version = 11 : i64} {
  func.func @_normalize_kernel(%arg0: i32, %arg1: memref<256x128xf32, #tpu.memory_space<vmem>>, %arg2: memref<256x128xf32, #tpu.memory_space<vmem>>) attributes {dimension_semantics = [#tpu.dimension_semantics<parallel>], iteration_bounds = array<i64: 4>, scalar_prefetch = 0 : i64, scratch_operands = 0 : i64, tpu.core_type = #tpu.core_type<tc>, window_params = [{transform_indices = @transform_0, window_bounds = array<i64: 256, 128>}, {transform_indices = @transform_1, window_bounds = array<i64: 256, 128>}]} {
    %c0 = arith.constant 0 : index
    %c0_0 = arith.constant 0 : index
    %0 = vector.load %arg1[%c0, %c0_0] : memref<256x128xf32, #tpu.memory_space<vmem>>, vector<256x128xf32>
    %1 = arith.mulf %0, %0 : vector<256x128xf32>
    %cst = arith.constant dense<0.000000e+00> : vector<256xf32>
    %2 = vector.multi_reduction <add>, %1, %cst [1] : vector<256x128xf32> to vector<256xf32>
    %3 = vector.shape_cast %2 : vector<256xf32> to vector<256x1xf32>
    %4 = math.rsqrt %3 : vector<256x1xf32>
    %5 = vector.broadcast %4 : vector<256x1xf32> to vector<256x128xf32>
    %6 = arith.mulf %0, %5 : vector<256x128xf32>
    %c0_1 = arith.constant 0 : index
    %c0_2 = arith.constant 0 : index
    %7 = vector.load %arg2[%c0_1, %c0_2] : memref<256x128xf32, #tpu.memory_space<vmem>>, vector<256x128xf32>
    tpu.vector_store %arg2[%c0_1, %c0_2], %6 {strides = array<i32>} : memref<256x128xf32, #tpu.memory_space<vmem>>, vector<256x128xf32>,
    return
  }
  func.func @transform_0(%arg0: i32) -> (i32, i32) {
    %c0_i32 = arith.constant 0 : i32
    %c0_i32_0 = arith.constant 0 : i32
    return %arg0, %c0_i32 : i32, i32
  }
  func.func @transform_1(%arg0: i32) -> (i32, i32) {
    %c0_i32 = arith.constant 0 : i32
    %c0_i32_0 = arith.constant 0 : i32
    return %arg0, %c0_i32 : i32, i32
  }
}

</mosaic_0001>

<llo_original>
// kernel: tpu_custom_call.1
$region0: #{tpu_custom_call.1}
  #allocation0 [shape = 'u32[]', space=smem, size = 0x4, offset = 0x4, fixed_abs, tag = 'smem constant byte address 0x4 - core index']
  #allocation1 [shape = 'u32[144,128]{1,0:T(1,128)}', space=vmem, size = 0x12000, scoped, tag = 'internal scratch']
  %s0 = inlined_call_operand.hbm [shape: f32[1024,128], index: 0, kind: input, shape index: {}]
  %s1 = inlined_call_operand.hbm [shape: f32[1024,128], index: 1, kind: output, shape index: {}]
  %s2 = sld [smem:[#allocation0]]
  $region41: #{tpu_custom_call.1} parent=0
    _
  %s4 = ssub.s32 1, %s2
  %s5 = scalar_select 0, %s4, %s2
  $region1: #{tpu_custom_call.1} parent=0
    #allocation2 [shape = 'u8[262144]{0}', space=vmem, size = 0x40000, scoped, tag = 'input window, operand 0']
    #allocation3 [shape = 's32[2]{0}', space=sflag, size = 0x8, scoped, tag = 'scoped memory for tpu_custom_call.1']
    #allocation4 [shape = 's32[2]{0}', space=sflag, size = 0x8, scoped, tag = 'scoped memory for tpu_custom_call.1']
    #allocation5 [shape = 'u8[262144]{0}', space=vmem, size = 0x40000, scoped, tag = 'output window, operand 0']
    %6 = vsyncpa [#allocation3], 0
    %s7 = scalar_lea.sflag [#allocation3], 1
    %8 = vsyncpa %s7, 0
    %9 = vsyncpa [#allocation4], 0
    %s10 = scalar_lea.sflag [#allocation4], 1
    %11 = vsyncpa %s10, 0
    loop: start=0, step=1, limit=6
    $region2: #{tpu_custom_call.1} parent=1 // loop_pre_header
      _
    $region3: #{tpu_custom_call.1} parent=1 // loop_header
      %s13 = sphi 0, %s17
      %p14 = scmp.ge.s32.totalorder %s13, 6
      %s23 = sphi 0, %s25
      %s26 = sphi 0, %s23
      %s27 = sphi 0, %s26
      %s43 = sphi 0, %s27
      %s49 = sphi 0, %s51
      %s52 = sphi 0, %s49
      %s53 = sphi 0, %s52
      %s69 = sphi 0, %s53
    $region4: #{tpu_custom_call.1} parent=1 // loop_header_branch
      %16 = sbr.rel (%p14) target = $region8
    $region5: #{tpu_custom_call.1} parent=1 // loop_body
      %s18 = ssub.s32 %s13, 1
      %s19 = ssub.s32 %s13, 2
      %s20 = sadd.s32 %s13, 1
      %s21 = ssub.s32 %s13, %s20
      %p22 = scmp.eq.s32.totalorder %s21, 0
      %s24 = sadd.s32 %s23, 1
      %s25 = scalar_select %p22, %s23, %s24
      %p28 = pneg %p22
      %p29 = scmp.eq.s32.totalorder %s13, 3
      %p30 = por %p28, %p29
      %p31 = scmp.ne.s32.totalorder %s23, %s26
      %p32 = scmp.eq.s32.totalorder %s13, 0
      %p33 = por %p31, %p32
      %p34 = scmp.ne.s32.totalorder %s23, %s26
      %p35 = scmp.eq.s32.totalorder %s18, 3
      %p36 = por %p34, %p35
      %p37 = scmp.ne.s32.totalorder %s26, %s27
      %p38 = scmp.eq.s32.totalorder %s18, 0
      %p39 = por %p37, %p38
      %p40 = scmp.ne.s32.totalorder %s26, %s27
      %p41 = scmp.eq.s32.totalorder %s19, 3
      %p42 = por %p40, %p41
      %p44 = scmp.ne.s32.totalorder %s27, %s43
      %p45 = scmp.eq.s32.totalorder %s19, 0
      %p46 = por %p44, %p45
      %s47 = ssub.s32 %s13, %s20
      %p48 = scmp.eq.s32.totalorder %s47, 0
      %s50 = sadd.s32 %s49, 1
      %s51 = scalar_select %p48, %s49, %s50
      %p54 = pneg %p48
      %p55 = scmp.eq.s32.totalorder %s13, 3
      %p56 = por %p54, %p55
      %p57 = scmp.ne.s32.totalorder %s49, %s52
      %p58 = scmp.eq.s32.totalorder %s13, 0
      %p59 = por %p57, %p58
      %p60 = scmp.ne.s32.totalorder %s49, %s52
      %p61 = scmp.eq.s32.totalorder %s18, 3
      %p62 = por %p60, %p61
      %p63 = scmp.ne.s32.totalorder %s52, %s53
      %p64 = scmp.eq.s32.totalorder %s18, 0
      %p65 = por %p63, %p64
      %p66 = scmp.ne.s32.totalorder %s52, %s53
      %p67 = scmp.eq.s32.totalorder %s19, 3
      %p68 = por %p66, %p67
      %p70 = scmp.ne.s32.totalorder %s53, %s69
      %p71 = scmp.eq.s32.totalorder %s19, 0
      %p72 = por %p70, %p71
      %p73 = scmp.le.s32.totalorder 1, %s13
      %p74 = scmp.lt.s32.totalorder %s13, 5
      %p75 = pnand %p73, %p74
      %p76 = pneg %p75
      // Predicated region
      $region9: #{tpu_custom_call.1} parent=5 // pred_check
        _
      $region10: #{tpu_custom_call.1} parent=5 // pred_check_branch
        %78 = sbr.rel (%p75) target = $region12
      $region11: #{tpu_custom_call.1} parent=5 // pred_region
        %s79 = ssub.s32 %s13, 1
      $region12: #{tpu_custom_call.1} parent=5 // pred_fallthru
        _
      %p80 = scmp.lt.s32.totalorder %s13, 4
      // Predicated region
      $region13: #{tpu_custom_call.1} parent=5 // pred_check
        %p81 = pneg %p80
      $region14: #{tpu_custom_call.1} parent=5 // pred_check_branch
        %83 = sbr.rel (%p81) target = $region16
      $region15: #{tpu_custom_call.1} parent=5 // pred_region
        // Predicated region
        $region17: #{tpu_custom_call.1} parent=15 // pred_check
          %p84 = pneg %p33
        $region18: #{tpu_custom_call.1} parent=15 // pred_check_branch
          %86 = sbr.rel (%p84) target = $region20
        $region19: #{tpu_custom_call.1} parent=15 // pred_region
          %s87 = sand.u32 %s23, 1
          %s88 = scalar_lea.sflag [#allocation3], %s87
          %s89 = sand.u32 %s23, 1
          %s90 = smul.addr %s89, 256
          %s91 = scalar_lea.vmem [#allocation2], %s90
          %s92 = smul.u32 32, %s13
          %s94 = ssub.s32 4096, 4096
          %95 = vsyncadd %s88, %s94
          %s96 = smul.addr %s92, 128
          %s97 = scalar_lea.hbm %s0, %s96
          %s98 = sshll.u32 %s91, 4
          %s99 = int_to_ptr.vmem [resolvable:$true] %s98
          %104 = dma.hbm_to_vmem [thread:$0]  %s97, 4096, %s99, %s88, 128, 128, 8
        $region20: #{tpu_custom_call.1} parent=15 // pred_fallthru
          _
      $region16: #{tpu_custom_call.1} parent=5 // pred_fallthru
        _
      %p105 = scmp.le.s32.totalorder 1, %s13
      %p106 = scmp.lt.s32.totalorder %s13, 5
      %p107 = pnand %p105, %p106
      %p108 = pneg %p107
      // Predicated region
      $region21: #{tpu_custom_call.1} parent=5 // pred_check
        _
      $region22: #{tpu_custom_call.1} parent=5 // pred_check_branch
        %110 = sbr.rel (%p107) target = $region24
      $region23: #{tpu_custom_call.1} parent=5 // pred_region
        %s111 = ssub.s32 %s13, 1
        %s112 = sand.u32 %s26, 1
        %s113 = scalar_lea.sflag [#allocation3], %s112
        %s114 = sand.u32 %s26, 1
        %s115 = smul.addr %s114, 256
        %s116 = scalar_lea.vmem [#allocation2], %s115
        // Predicated region
        $region25: #{tpu_custom_call.1} parent=23 // pred_check
          %p117 = pneg %p39
        $region26: #{tpu_custom_call.1} parent=23 // pred_check_branch
          %119 = sbr.rel (%p117) target = $region28
        $region27: #{tpu_custom_call.1} parent=23 // pred_region
          %120 = dma.done %s113, 4096
        $region28: #{tpu_custom_call.1} parent=23 // pred_fallthru
          _
        %s121 = sand.u32 %s26, 1
        %s122 = scalar_lea.sflag [#allocation3], %s121
        %s123 = sand.u32 %s26, 1
        %s124 = smul.addr %s123, 256
        %s125 = scalar_lea.vmem [#allocation2], %s124
        %p126 = pneg %p39
        %p127 = pneg %p36
        %p128 = pneg %p65
        %p129 = pneg %p62
        %s130 = sand.u32 %s52, 1
        %s131 = scalar_lea.sflag [#allocation4], %s130
        %s132 = sand.u32 %s52, 1
        %s133 = smul.addr %s132, 256
        %s134 = scalar_lea.vmem [#allocation5], %s133
        %s135 = smul.u32 32, %s18
        %s136 = smul.u32 32, %s18
        %v137 = vld [vmem:[%s116] sm:$0xff]
        %v138 = vld [vmem:[%s116 + $0x8] sm:$0xff]
        %v139 = vld [vmem:[%s116 + $0x10] sm:$0xff]
        %v140 = vld [vmem:[%s116 + $0x18] sm:$0xff]
        %v141 = vld [vmem:[%s116 + $0x20] sm:$0xff]
        %v142 = vld [vmem:[%s116 + $0x28] sm:$0xff]
        %v143 = vld [vmem:[%s116 + $0x30] sm:$0xff]
        %v144 = vld [vmem:[%s116 + $0x38] sm:$0xff]
        %v145 = vld [vmem:[%s116 + $0x40] sm:$0xff]
        %v146 = vld [vmem:[%s116 + $0x48] sm:$0xff]
        %v147 = vld [vmem:[%s116 + $0x50] sm:$0xff]
        %v148 = vld [vmem:[%s116 + $0x58] sm:$0xff]
        %v149 = vld [vmem:[%s116 + $0x60] sm:$0xff]
        %v150 = vld [vmem:[%s116 + $0x68] sm:$0xff]
        %v151 = vld [vmem:[%s116 + $0x70] sm:$0xff]
        %v152 = vld [vmem:[%s116 + $0x78] sm:$0xff]
        %v153 = vld [vmem:[%s116 + $0x80] sm:$0xff]
        %v154 = vld [vmem:[%s116 + $0x88] sm:$0xff]
        %v155 = vld [vmem:[%s116 + $0x90] sm:$0xff]
        %v156 = vld [vmem:[%s116 + $0x98] sm:$0xff]
        %v157 = vld [vmem:[%s116 + $0xa0] sm:$0xff]
        %v158 = vld [vmem:[%s116 + $0xa8] sm:$0xff]
        %v159 = vld [vmem:[%s116 + $0xb0] sm:$0xff]
        %v160 = vld [vmem:[%s116 + $0xb8] sm:$0xff]
        %v161 = vld [vmem:[%s116 + $0xc0] sm:$0xff]
        %v162 = vld [vmem:[%s116 + $0xc8] sm:$0xff]
        %v163 = vld [vmem:[%s116 + $0xd0] sm:$0xff]
        %v164 = vld [vmem:[%s116 + $0xd8] sm:$0xff]
        %v165 = vld [vmem:[%s116 + $0xe0] sm:$0xff]
        %v166 = vld [vmem:[%s116 + $0xe8] sm:$0xff]
        %v167 = vld [vmem:[%s116 + $0xf0] sm:$0xff]
        %v168 = vld [vmem:[%s116 + $0xf8] sm:$0xff]
        %v169 = vmul.f32 %v137, %v137
        %v170 = vmul.f32 %v138, %v138
        %v171 = vmul.f32 %v139, %v139
        %v172 = vmul.f32 %v140, %v140
        %v173 = vmul.f32 %v141, %v141
        %v174 = vmul.f32 %v142, %v142
        %v175 = vmul.f32 %v143, %v143
        %v176 = vmul.f32 %v144, %v144
        %v177 = vmul.f32 %v145, %v145
        %v178 = vmul.f32 %v146, %v146
        %v179 = vmul.f32 %v147, %v147
        %v180 = vmul.f32 %v148, %v148
        %v181 = vmul.f32 %v149, %v149
        %v182 = vmul.f32 %v150, %v150
        %v183 = vmul.f32 %v151, %v151
        %v184 = vmul.f32 %v152, %v152
        %v185 = vmul.f32 %v153, %v153
        %v186 = vmul.f32 %v154, %v154
        %v187 = vmul.f32 %v155, %v155
        %v188 = vmul.f32 %v156, %v156
        %v189 = vmul.f32 %v157, %v157
        %v190 = vmul.f32 %v158, %v158
        %v191 = vmul.f32 %v159, %v159
        %v192 = vmul.f32 %v160, %v160
        %v193 = vmul.f32 %v161, %v161
        %v194 = vmul.f32 %v162, %v162
        %v195 = vmul.f32 %v163, %v163
        %v196 = vmul.f32 %v164, %v164
        %v197 = vmul.f32 %v165, %v165
        %v198 = vmul.f32 %v166, %v166
        %v199 = vmul.f32 %v167, %v167
        %v200 = vmul.f32 %v168, %v168
        %201 = vadd.xlane.f32.xlu0 %v169
        %v202 = vpop.xlane.xlu0 %201
        %203 = vadd.xlane.f32.xlu0 %v170
        %v204 = vpop.xlane.xlu0 %203
        %205 = vadd.xlane.f32.xlu0 %v171
        %v206 = vpop.xlane.xlu0 %205
        %207 = vadd.xlane.f32.xlu0 %v172
        %v208 = vpop.xlane.xlu0 %207
        %209 = vadd.xlane.f32.xlu0 %v173
        %v210 = vpop.xlane.xlu0 %209
        %211 = vadd.xlane.f32.xlu0 %v174
        %v212 = vpop.xlane.xlu0 %211
        %213 = vadd.xlane.f32.xlu0 %v175
        %v214 = vpop.xlane.xlu0 %213
        %215 = vadd.xlane.f32.xlu0 %v176
        %v216 = vpop.xlane.xlu0 %215
        %217 = vadd.xlane.f32.xlu0 %v177
        %v218 = vpop.xlane.xlu0 %217
        %219 = vadd.xlane.f32.xlu0 %v178
        %v220 = vpop.xlane.xlu0 %219
        %221 = vadd.xlane.f32.xlu0 %v179
        %v222 = vpop.xlane.xlu0 %221
        %223 = vadd.xlane.f32.xlu0 %v180
        %v224 = vpop.xlane.xlu0 %223
        %225 = vadd.xlane.f32.xlu0 %v181
        %v226 = vpop.xlane.xlu0 %225
        %227 = vadd.xlane.f32.xlu0 %v182
        %v228 = vpop.xlane.xlu0 %227
        %229 = vadd.xlane.f32.xlu0 %v183
        %v230 = vpop.xlane.xlu0 %229
        %231 = vadd.xlane.f32.xlu0 %v184
        %v232 = vpop.xlane.xlu0 %231
        %233 = vadd.xlane.f32.xlu0 %v185
        %v234 = vpop.xlane.xlu0 %233
        %235 = vadd.xlane.f32.xlu0 %v186
        %v236 = vpop.xlane.xlu0 %235
        %237 = vadd.xlane.f32.xlu0 %v187
        %v238 = vpop.xlane.xlu0 %237
        %239 = vadd.xlane.f32.xlu0 %v188
        %v240 = vpop.xlane.xlu0 %239
        %241 = vadd.xlane.f32.xlu0 %v189
        %v242 = vpop.xlane.xlu0 %241
        %243 = vadd.xlane.f32.xlu0 %v190
        %v244 = vpop.xlane.xlu0 %243
        %245 = vadd.xlane.f32.xlu0 %v191
        %v246 = vpop.xlane.xlu0 %245
        %247 = vadd.xlane.f32.xlu0 %v192
        %v248 = vpop.xlane.xlu0 %247
        %249 = vadd.xlane.f32.xlu0 %v193
        %v250 = vpop.xlane.xlu0 %249
        %251 = vadd.xlane.f32.xlu0 %v194
        %v252 = vpop.xlane.xlu0 %251
        %253 = vadd.xlane.f32.xlu0 %v195
        %v254 = vpop.xlane.xlu0 %253
        %255 = vadd.xlane.f32.xlu0 %v196
        %v256 = vpop.xlane.xlu0 %255
        %257 = vadd.xlane.f32.xlu0 %v197
        %v258 = vpop.xlane.xlu0 %257
        %259 = vadd.xlane.f32.xlu0 %v198
        %v260 = vpop.xlane.xlu0 %259
        %261 = vadd.xlane.f32.xlu0 %v199
        %v262 = vpop.xlane.xlu0 %261
        %263 = vadd.xlane.f32.xlu0 %v200
        %v264 = vpop.xlane.xlu0 %263
        %v265 = vrsqrt.pop %v202
        %v266 = vrsqrt.pop %v204
        %v267 = vrsqrt.pop %v206
        %v268 = vrsqrt.pop %v208
        %v269 = vrsqrt.pop %v210
        %v270 = vrsqrt.pop %v212
        %v271 = vrsqrt.pop %v214
        %v272 = vrsqrt.pop %v216
        %v273 = vrsqrt.pop %v218
        %v274 = vrsqrt.pop %v220
        %v275 = vrsqrt.pop %v222
        %v276 = vrsqrt.pop %v224
        %v277 = vrsqrt.pop %v226
        %v278 = vrsqrt.pop %v228
        %v279 = vrsqrt.pop %v230
        %v280 = vrsqrt.pop %v232
        %v281 = vrsqrt.pop %v234
        %v282 = vrsqrt.pop %v236
        %v283 = vrsqrt.pop %v238
        %v284 = vrsqrt.pop %v240
        %v285 = vrsqrt.pop %v242
        %v286 = vrsqrt.pop %v244
        %v287 = vrsqrt.pop %v246
        %v288 = vrsqrt.pop %v248
        %v289 = vrsqrt.pop %v250
        %v290 = vrsqrt.pop %v252
        %v291 = vrsqrt.pop %v254
        %v292 = vrsqrt.pop %v256
        %v293 = vrsqrt.pop %v258
        %v294 = vrsqrt.pop %v260
        %v295 = vrsqrt.pop %v262
        %v296 = vrsqrt.pop %v264
        %v297 = vmul.f32 %v137, %v265
        %v298 = vmul.f32 %v138, %v266
        %v299 = vmul.f32 %v139, %v267
        %v300 = vmul.f32 %v140, %v268
        %v301 = vmul.f32 %v141, %v269
        %v302 = vmul.f32 %v142, %v270
        %v303 = vmul.f32 %v143, %v271
        %v304 = vmul.f32 %v144, %v272
        %v305 = vmul.f32 %v145, %v273
        %v306 = vmul.f32 %v146, %v274
        %v307 = vmul.f32 %v147, %v275
        %v308 = vmul.f32 %v148, %v276
        %v309 = vmul.f32 %v149, %v277
        %v310 = vmul.f32 %v150, %v278
        %v311 = vmul.f32 %v151, %v279
        %v312 = vmul.f32 %v152, %v280
        %v313 = vmul.f32 %v153, %v281
        %v314 = vmul.f32 %v154, %v282
        %v315 = vmul.f32 %v155, %v283
        %v316 = vmul.f32 %v156, %v284
        %v317 = vmul.f32 %v157, %v285
        %v318 = vmul.f32 %v158, %v286
        %v319 = vmul.f32 %v159, %v287
        %v320 = vmul.f32 %v160, %v288
        %v321 = vmul.f32 %v161, %v289
        %v322 = vmul.f32 %v162, %v290
        %v323 = vmul.f32 %v163, %v291
        %v324 = vmul.f32 %v164, %v292
        %v325 = vmul.f32 %v165, %v293
        %v326 = vmul.f32 %v166, %v294
        %v327 = vmul.f32 %v167, %v295
        %v328 = vmul.f32 %v168, %v296
        %329 = vst [vmem:[%s134] sm:$0xff] %v297
        %330 = vst [vmem:[%s134 + $0x8] sm:$0xff] %v298
        %331 = vst [vmem:[%s134 + $0x10] sm:$0xff] %v299
        %332 = vst [vmem:[%s134 + $0x18] sm:$0xff] %v300
        %333 = vst [vmem:[%s134 + $0x20] sm:$0xff] %v301
        %334 = vst [vmem:[%s134 + $0x28] sm:$0xff] %v302
        %335 = vst [vmem:[%s134 + $0x30] sm:$0xff] %v303
        %336 = vst [vmem:[%s134 + $0x38] sm:$0xff] %v304
        %337 = vst [vmem:[%s134 + $0x40] sm:$0xff] %v305
        %338 = vst [vmem:[%s134 + $0x48] sm:$0xff] %v306
        %339 = vst [vmem:[%s134 + $0x50] sm:$0xff] %v307
        %340 = vst [vmem:[%s134 + $0x58] sm:$0xff] %v308
        %341 = vst [vmem:[%s134 + $0x60] sm:$0xff] %v309
        %342 = vst [vmem:[%s134 + $0x68] sm:$0xff] %v310
        %343 = vst [vmem:[%s134 + $0x70] sm:$0xff] %v311
        %344 = vst [vmem:[%s134 + $0x78] sm:$0xff] %v312
        %345 = vst [vmem:[%s134 + $0x80] sm:$0xff] %v313
        %346 = vst [vmem:[%s134 + $0x88] sm:$0xff] %v314
        %347 = vst [vmem:[%s134 + $0x90] sm:$0xff] %v315
        %348 = vst [vmem:[%s134 + $0x98] sm:$0xff] %v316
        %349 = vst [vmem:[%s134 + $0xa0] sm:$0xff] %v317
        %350 = vst [vmem:[%s134 + $0xa8] sm:$0xff] %v318
        %351 = vst [vmem:[%s134 + $0xb0] sm:$0xff] %v319
        %352 = vst [vmem:[%s134 + $0xb8] sm:$0xff] %v320
        %353 = vst [vmem:[%s134 + $0xc0] sm:$0xff] %v321
        %354 = vst [vmem:[%s134 + $0xc8] sm:$0xff] %v322
        %355 = vst [vmem:[%s134 + $0xd0] sm:$0xff] %v323
        %356 = vst [vmem:[%s134 + $0xd8] sm:$0xff] %v324
        %357 = vst [vmem:[%s134 + $0xe0] sm:$0xff] %v325
        %358 = vst [vmem:[%s134 + $0xe8] sm:$0xff] %v326
        %359 = vst [vmem:[%s134 + $0xf0] sm:$0xff] %v327
        %360 = vst [vmem:[%s134 + $0xf8] sm:$0xff] %v328
        %s361 = sand.u32 %s52, 1
        %s362 = scalar_lea.sflag [#allocation4], %s361
        %s363 = sand.u32 %s52, 1
        %s364 = smul.addr %s363, 256
        %s365 = scalar_lea.vmem [#allocation5], %s364
        // Predicated region
        $region29: #{tpu_custom_call.1} parent=23 // pred_check
          %p366 = pneg %p62
        $region30: #{tpu_custom_call.1} parent=23 // pred_check_branch
          %368 = sbr.rel (%p366) target = $region32
        $region31: #{tpu_custom_call.1} parent=23 // pred_region
          %s369 = smul.u32 32, %s18
          %s371 = ssub.s32 4096, 4096
          %372 = vsyncadd %s362, %s371
          %s373 = smul.addr %s369, 128
          %s374 = scalar_lea.hbm %s1, %s373
          %s375 = sshll.u32 %s365, 4
          %s376 = int_to_ptr.vmem [resolvable:$true] %s375
          %381 = dma.vmem_to_hbm [thread:$0]  %s376, 4096, %s374, %s362, 128, 128, 8
        $region32: #{tpu_custom_call.1} parent=23 // pred_fallthru
          _
      $region24: #{tpu_custom_call.1} parent=5 // pred_fallthru
        _
      %p382 = scmp.le.s32.totalorder 2, %s13
      // Predicated region
      $region33: #{tpu_custom_call.1} parent=5 // pred_check
        %p383 = pneg %p382
      $region34: #{tpu_custom_call.1} parent=5 // pred_check_branch
        %385 = sbr.rel (%p383) target = $region36
      $region35: #{tpu_custom_call.1} parent=5 // pred_region
        %s386 = ssub.s32 %s13, 2
        // Predicated region
        $region37: #{tpu_custom_call.1} parent=35 // pred_check
          %p387 = pneg %p68
        $region38: #{tpu_custom_call.1} parent=35 // pred_check_branch
          %389 = sbr.rel (%p387) target = $region40
        $region39: #{tpu_custom_call.1} parent=35 // pred_region
          %s390 = sand.u32 %s53, 1
          %s391 = scalar_lea.sflag [#allocation4], %s390
          %s392 = sand.u32 %s53, 1
          %s393 = smul.addr %s392, 256
          %s394 = scalar_lea.vmem [#allocation5], %s393
          %395 = dma.done %s391, 4096
        $region40: #{tpu_custom_call.1} parent=35 // pred_fallthru
          _
      $region36: #{tpu_custom_call.1} parent=5 // pred_fallthru
        _
    $region6: #{tpu_custom_call.1} parent=1 // loop_footer
      %s17 = sadd.s32 1, %s13
    $region7: #{tpu_custom_call.1} parent=1 // loop_footer_branch
      %12 = sbr.rel target = $region3
    $region8: #{tpu_custom_call.1} parent=1 // loop_exit
      _
    %396 = vsyncpa [#allocation3], 1
    %s397 = scalar_lea.sflag [#allocation3], 1
    %398 = vsyncpa %s397, 1
    %399 = vsyncpa [#allocation4], 1
    %s400 = scalar_lea.sflag [#allocation4], 1
    %401 = vsyncpa %s400, 1

</llo_original>
